<compile_context>
chip_gen: v7x
topology: tpu7x:2x2x1
jax: 0.10.0
libtpu: 0.0.40
codegen_flags: <defaults>
</compile_context>

<pallas_src>
import functools
from types import SimpleNamespace

import jax
import jax.numpy as jnp
from jax.experimental import pallas as pl
from jax.experimental.pallas import tpu as pltpu

MIN_GRID_STEPS = 4           # keep the "parallel" row axis shardable (v7x: 2 TCs)

_GELU_C0 = 0.7978845608028654   # sqrt(2/pi) -- Python float, NOT a jnp constant
_GELU_C1 = 0.044715


# ----------------------------------------------------------------------------
# Generation-aware tuning
# ----------------------------------------------------------------------------
@functools.lru_cache(maxsize=1)
def _tpu_tuning():
    """Returns (row_target, vmem_limit_bytes); safe fallback if no TPU info."""
    try:
        info = pltpu.get_tpu_info()
        vmem = int(getattr(info, "vmem_capacity_bytes"))
    except Exception:
        return 256, 48 * 1024 * 1024                    # safe on every generation
    if vmem >= 100 * 1024 * 1024:                        # v5e / v6e: 128 MiB VMEM
        return 512, 100 * 1024 * 1024
    # v7x-class (64 MiB VMEM): smaller row tiles, leave headroom.
    return 256, min(48 * 1024 * 1024, (vmem * 3) // 4)


def _row_tile(m, row_target):
    # >= MIN_GRID_STEPS grid steps so dimension_semantics=("parallel",) can
    # shard the rows across both v7x TensorCores; sublane aligned.
    rt = min(row_target, ((pl.cdiv(m, MIN_GRID_STEPS) + 7) // 8) * 8)
    return max(8, rt)


def _const_spec(block_shape, index_map):
    """BlockSpec for a grid-invariant operand: single pipeline buffer (don't
    waste VMEM double-buffering resident weights)."""
    try:
        return pl.BlockSpec(block_shape, index_map,
                            pipeline_mode=pl.Buffered(buffer_count=1))
    except Exception:        # pipeline_mode/Buffered unavailable -> default (2)
        return pl.BlockSpec(block_shape, index_map)


def _gelu_tanh(y):
    # tanh-approx GELU (EUP tanh; Python-float constants only).
    return 0.5 * y * (1.0 + jnp.tanh(_GELU_C0 * (y + _GELU_C1 * y * y * y)))


# ----------------------------------------------------------------------------
# Pallas kernels
# ----------------------------------------------------------------------------
def _patch_embed_kernel(*refs, apply_mask):
    """y = x @ W + b ; optionally y[row] = mask_token where mask[row]."""
    if apply_mask:
        x_ref, w_ref, b_ref, mt_ref, m_ref, o_ref = refs
    else:
        x_ref, w_ref, b_ref, o_ref = refs
    x = x_ref[...].astype(jnp.bfloat16)                        # bf16 into MXU
    y = jnp.dot(x, w_ref[...], preferred_element_type=jnp.float32)
    y = y + b_ref[...].astype(jnp.float32)
    if apply_mask:
        mt = mt_ref[...].astype(jnp.float32)                   # [1, D]
        masked = m_ref[...] > 0.5                              # [rt, 1]
        y = jnp.where(masked, mt, y)                           # VPU select
    o_ref[...] = y.astype(o_ref.dtype)


def _mlp_ln_kernel(x_ref, w1_ref, b1_ref, w2_ref, b2_ref, g_ref, bln_ref,
                   norm_ref, pre_ref, *, eps):
    """Fused MLP block + residual + LayerNorm for one row tile."""
    x32 = x_ref[...].astype(jnp.float32)

    h1 = jnp.dot(x32.astype(jnp.bfloat16), w1_ref[...],
                 preferred_element_type=jnp.float32)
    h1 = _gelu_tanh(h1 + b1_ref[...].astype(jnp.float32))

    h2 = jnp.dot(h1.astype(jnp.bfloat16), w2_ref[...],
                 preferred_element_type=jnp.float32)
    h2 = h2 + b2_ref[...].astype(jnp.float32)

    pre = x32 + h2
    pre_ref[...] = pre.astype(pre_ref.dtype)

    # Single-pass LayerNorm statistics: mean = E[x], var = E[x^2] - mean^2.
    inv_d = 1.0 / pre.shape[-1]
    mean = jnp.sum(pre, axis=-1, keepdims=True) * inv_d
    ex2 = jnp.sum(pre * pre, axis=-1, keepdims=True) * inv_d
    var = ex2 - mean * mean
    y = (pre - mean) * jax.lax.rsqrt(var + eps)
    y = y * g_ref[...].astype(jnp.float32) + bln_ref[...].astype(jnp.float32)
    norm_ref[...] = y.astype(norm_ref.dtype)


# ----------------------------------------------------------------------------
# Pallas wrappers
# ----------------------------------------------------------------------------
def pallas_patch_embed(patches, w_bf16, b, mask_token, mask=None):
    """patches: [M, K]; w_bf16: [K, D] bf16; mask: optional [M] (1 = replace)."""
    m, k = patches.shape
    n = w_bf16.shape[1]
    row_target, vmem_limit = _tpu_tuning()
    rt = _row_tile(m, row_target)
    grid = (pl.cdiv(m, rt),)
    b2 = b.reshape(1, n)
    zero2 = lambda i: (0, 0)

    # TODO(synk): pad K = C*patch^2 up to a 128/256 multiple in the weight
    # layout to avoid a partially filled final MXU pass per tile.
    if mask is None:
        kernel = functools.partial(_patch_embed_kernel, apply_mask=False)
        in_specs = [
            pl.BlockSpec((rt, k), lambda i: (i, 0)),
            _const_spec((k, n), zero2),
            _const_spec((1, n), zero2),
        ]
        args = (patches, w_bf16, b2)
    else:
        kernel = functools.partial(_patch_embed_kernel, apply_mask=True)
        mask2 = mask.reshape(m, 1).astype(jnp.float32)
        mt2 = mask_token.reshape(1, n)
        in_specs = [
            pl.BlockSpec((rt, k), lambda i: (i, 0)),
            _const_spec((k, n), zero2),
            _const_spec((1, n), zero2),
            _const_spec((1, n), zero2),
            pl.BlockSpec((rt, 1), lambda i: (i, 0)),
        ]
        args = (patches, w_bf16, b2, mt2, mask2)

    return pl.pallas_call(
        kernel,
        out_shape=jax.ShapeDtypeStruct((m, n), patches.dtype),
        grid=grid,
        in_specs=in_specs,
        out_specs=pl.BlockSpec((rt, n), lambda i: (i, 0)),
        compiler_params=pltpu.CompilerParams(
            dimension_semantics=("parallel",),
            vmem_limit_bytes=vmem_limit),
    )(*args)


def pallas_mlp_ln(x, w1_bf16, b1, w2_bf16, b2, gamma, beta, eps=1e-6):
    """Fused: returns (LayerNorm(x + MLP(x)), x + MLP(x)).  x: [M, D]."""
    m, d = x.shape
    f = w1_bf16.shape[1]
    row_target, vmem_limit = _tpu_tuning()
    rt = _row_tile(m, row_target)
    grid = (pl.cdiv(m, rt),)
    zero2 = lambda i: (0, 0)
    norm, pre = pl.pallas_call(
        functools.partial(_mlp_ln_kernel, eps=eps),
        out_shape=(jax.ShapeDtypeStruct((m, d), x.dtype),
                   jax.ShapeDtypeStruct((m, d), x.dtype)),
        grid=grid,
        in_specs=[
            pl.BlockSpec((rt, d), lambda i: (i, 0)),
            _const_spec((d, f), zero2),     # resident bf16 weights, 1 buffer
            _const_spec((1, f), zero2),
            _const_spec((f, d), zero2),
            _const_spec((1, d), zero2),
            _const_spec((1, d), zero2),
            _const_spec((1, d), zero2),
        ],
        out_specs=(pl.BlockSpec((rt, d), lambda i: (i, 0)),
                   pl.BlockSpec((rt, d), lambda i: (i, 0))),
        compiler_params=pltpu.CompilerParams(
            dimension_semantics=("parallel",),
            vmem_limit_bytes=vmem_limit),
    )(x, w1_bf16, b1.reshape(1, f), w2_bf16, b2.reshape(1, d),
      gamma.reshape(1, d), beta.reshape(1, d))
    return norm, pre


# ----------------------------------------------------------------------------
# Synthetic ViT-like backbone (stands in for the teacher/student GTRS model)
# ----------------------------------------------------------------------------
def init_backbone_params(key, *, in_ch, patch, embed_dim, mlp_dim, num_reg):
    ks = jax.random.split(key, 6)
    pdim = in_ch * patch * patch
    nrm = lambda k, shape, scale: jax.random.normal(k, shape, jnp.float32) * scale
    return {
        "patch_w": nrm(ks[0], (pdim, embed_dim), 0.02),
        "patch_b": jnp.zeros((embed_dim,), jnp.float32),
        "cls_token": nrm(ks[1], (1, 1, embed_dim), 0.02),
        "reg_tokens": nrm(ks[2], (1, num_reg, embed_dim), 0.02),
        "mask_token": nrm(ks[3], (embed_dim,), 0.02),
        "mlp_w1": nrm(ks[4], (embed_dim, mlp_dim), 0.02),
        "mlp_b1": jnp.zeros((mlp_dim,), jnp.float32),
        "mlp_w2": nrm(ks[5], (mlp_dim, embed_dim), 0.02),
        "mlp_b2": jnp.zeros((embed_dim,), jnp.float32),
        "ln_g": jnp.ones((embed_dim,), jnp.float32),
        "ln_b": jnp.zeros((embed_dim,), jnp.float32),
    }


def _make_bf16_weights(params):
    # Cast once per parameter update, not per forward call.
    return {
        "patch_w": params["patch_w"].astype(jnp.bfloat16),
        "mlp_w1": params["mlp_w1"].astype(jnp.bfloat16),
        "mlp_w2": params["mlp_w2"].astype(jnp.bfloat16),
    }


def backbone_forward(params, wbf16, camera_feature, masks=None, *, patch, num_reg):
    """camera_feature: [B, C, H, W] (NCHW).  Returns the DINOv2-style dict."""
    b, c, h, w = camera_feature.shape
    nh, nw = h // patch, w // patch
    n = nh * nw
    d = params["patch_w"].shape[1]

    # TODO(synk): this 6-D transpose is still an XLA HBM pass; fold into the
    # embed kernel's index_map (or use NHWC upstream) for one fewer pass.
    patches = camera_feature.reshape(b, c, nh, patch, nw, patch)
    patches = jnp.transpose(patches, (0, 2, 4, 1, 3, 5)).reshape(
        b * n, c * patch * patch)

    mask_flat = None
    if masks is not None:
        mask_flat = masks.reshape(b * n).astype(jnp.float32)

    # patch embedding + DINOv2 mask-token substitution (one fused kernel)
    x = pallas_patch_embed(patches, wbf16["patch_w"], params["patch_b"],
                           params["mask_token"], mask=mask_flat)
    x = x.reshape(b, n, d)

    cls = jnp.broadcast_to(params["cls_token"], (b, 1, d))
    reg = jnp.broadcast_to(params["reg_tokens"], (b, num_reg, d))
    tokens = jnp.concatenate([cls, reg, x], axis=1)        # [B, 1+R+N, D]
    t = tokens.shape[1]
    flat = tokens.reshape(b * t, d)

    # fused MLP block (matmul1 + GELU + matmul2 + residual + LayerNorm)
    x_norm_flat, x_pre_flat = pallas_mlp_ln(
        flat, wbf16["mlp_w1"], params["mlp_b1"],
        wbf16["mlp_w2"], params["mlp_b2"],
        params["ln_g"], params["ln_b"])
    x_norm = x_norm_flat.reshape(b, t, d)
    x_prenorm = x_pre_flat.reshape(b, t, d)

    return {
        "x_norm_clstoken": x_norm[:, 0],
        "x_norm_regtokens": x_norm[:, 1: num_reg + 1],
        "x_norm_patchtokens": x_norm[:, num_reg + 1:],
        "x_prenorm": x_prenorm,
        "masks": masks,
    }


class SyntheticGTRSModel:
    """Minimal stand-in for the teacher/student model used by AugMetaArch."""

    def __init__(self, params, *, patch, num_reg, embed_dim):
        self.params = params
        self.patch = patch
        self.num_reg = num_reg
        self._backbone = SimpleNamespace(img_feat_c=embed_dim)
        self._wbf16 = None

    def _bf16_weights(self):
        if self._wbf16 is None:
            self._wbf16 = _make_bf16_weights(self.params)
        return self._wbf16

    def invalidate_weight_cache(self):
        self._wbf16 = None

    def __call__(self, features, masks=None, **kwargs):
        img = features["camera_feature"][-1]
        return backbone_forward(self.params, self._bf16_weights(), img,
                                masks=masks, patch=self.patch,
                                num_reg=self.num_reg)

    def forward_features_list(self, feat_dict_lst, mask_list=None):
        if mask_list is None:
            mask_list = [None] * len(feat_dict_lst)
        imgs = [fd["camera_feature"][-1] for fd in feat_dict_lst]
        v = len(imgs)
        b, _, h, w = imgs[0].shape
        n = (h // self.patch) * (w // self.patch)

        # Batch all views into ONE backbone pass (weights fetched once).
        stacked = jnp.concatenate(imgs, axis=0)
        if any(m is not None for m in mask_list):
            per_view = [(m.astype(bool) if m is not None
                         else jnp.zeros((b, n), jnp.bool_)) for m in mask_list]
            stacked_masks = jnp.concatenate(per_view, axis=0)
        else:
            stacked_masks = None

        out = backbone_forward(self.params, self._bf16_weights(), stacked,
                               masks=stacked_masks, patch=self.patch,
                               num_reg=self.num_reg)

        results = []
        for i in range(v):
            sl = slice(i * b, (i + 1) * b)
            results.append({
                "x_norm_clstoken": out["x_norm_clstoken"][sl],
                "x_norm_regtokens": out["x_norm_regtokens"][sl],
                "x_norm_patchtokens": out["x_norm_patchtokens"][sl],
                "x_prenorm": out["x_prenorm"][sl],
                "masks": mask_list[i],
            })
        return results


# ----------------------------------------------------------------------------
# AugMetaArch (forward-pass semantics of the PyTorch module)
# ----------------------------------------------------------------------------
class AugMetaArch:
    def __init__(self, cfg, teacher_model, student_model):
        self.cfg = cfg
        # NOTE: the reference implementation swaps the names (the 'student'
        # dict receives teacher_model and vice versa); reproduced exactly.
        self.student = {"model": teacher_model}
        self.teacher = {"model": student_model}
        self.embed_dim = teacher_model._backbone.img_feat_c
        # TODO(synk): fp16_scaler / backprop_loss are optimizer-side (autograd)
        # and have no forward-pass equivalent here.
        self.fp16_scaler = None

    def forward(self, teacher_ori_features, student_feat_dict_lst, **kwargs):
        def get_teacher_output():
            # @torch.no_grad() equivalent
            out = self.teacher["model"](teacher_ori_features)
            return jax.tree_util.tree_map(jax.lax.stop_gradient, out)

        if self.cfg.training:
            teacher_pred = get_teacher_output()
        elif self.cfg.inference.model == "teacher":
            teacher_pred = self.teacher["model"](teacher_ori_features, **kwargs)
        else:
            teacher_pred = self.student["model"](teacher_ori_features, **kwargs)

        if not self.cfg.training:
            return (teacher_pred, [], {})

        if self.cfg.lab.optimize_prev_frame_traj_for_ec:
            teacher_pred = {"cur": teacher_pred}
            teacher_prev_feat = {
                "camera_feature": [teacher_ori_features["camera_feature"][-2]],
                "status_feature": [teacher_ori_features["status_feature"][1]],
            }
            prev_pred = self.teacher["model"](teacher_prev_feat, **kwargs)
            teacher_pred["prev"] = prev_pred

        loss_dict = {}
        student_preds = self.student["model"].forward_features_list(
            student_feat_dict_lst,
            mask_list=[kwargs.get("collated_masks", None)]
            + [None] * len(student_feat_dict_lst[1:]),
        )
        return (teacher_pred, student_preds, loss_dict)

    def update_teacher(self, m):
        # EMA: teacher = m * teacher + (1 - m) * student  (parameter pytrees)
        stu = self.student["model"].params
        tea = self.teacher["model"].params
        self.teacher["model"].params = jax.tree_util.tree_map(
            lambda t, s: t * m + s * (1.0 - m), tea, stu
        )
        self.teacher["model"].invalidate_weight_cache()


# ----------------------------------------------------------------------------
# Pure-JAX reference (f32) for a correctness check
# ----------------------------------------------------------------------------
def reference_backbone(params, img, masks=None, *, patch, num_reg, eps=1e-6):
    b, c, h, w = img.shape
    nh, nw = h // patch, w // patch
    n = nh * nw
    d = params["patch_w"].shape[1]
    p = img.reshape(b, c, nh, patch, nw, patch)
    p = jnp.transpose(p, (0, 2, 4, 1, 3, 5)).reshape(b, n, -1)
    x = p @ params["patch_w"] + params["patch_b"]
    if masks is not None:
        x = jnp.where(masks[..., None], params["mask_token"][None, None, :], x)
    cls = jnp.broadcast_to(params["cls_token"], (b, 1, d))
    reg = jnp.broadcast_to(params["reg_tokens"], (b, num_reg, d))
    t = jnp.concatenate([cls, reg, x], axis=1)
    h1 = t @ params["mlp_w1"] + params["mlp_b1"]
    h1 = 0.5 * h1 * (1.0 + jnp.tanh(_GELU_C0 * (h1 + _GELU_C1 * h1 ** 3)))
    h2 = h1 @ params["mlp_w2"] + params["mlp_b2"]
    pre = t + h2
    mu = pre.mean(-1, keepdims=True)
    var = ((pre - mu) ** 2).mean(-1, keepdims=True)
    xn = (pre - mu) * jax.lax.rsqrt(var + eps)
    return xn * params["ln_g"] + params["ln_b"]


# ----------------------------------------------------------------------------
# Demo
# ----------------------------------------------------------------------------
if __name__ == "__main__":
    key = jax.random.PRNGKey(0)
    B, C, H, W = 2, 3, 16, 16
    PATCH, EMBED, MLP, NUM_REG = 4, 128, 256, 2     # EMBED lane-dense (128)
    NUM_PATCHES = (H // PATCH) * (W // PATCH)

    k_img, k_aug, k_t, k_s, k_m = jax.random.split(key, 5)
    img = jax.random.normal(k_img, (B, C, H, W), jnp.float32)
    img_aug = jax.random.normal(k_aug, (B, C, H, W), jnp.float32)

    teacher_params = init_backbone_params(
        k_t, in_ch=C, patch=PATCH, embed_dim=EMBED, mlp_dim=MLP, num_reg=NUM_REG)
    student_params = init_backbone_params(
        k_s, in_ch=C, patch=PATCH, embed_dim=EMBED, mlp_dim=MLP, num_reg=NUM_REG)

    teacher_model = SyntheticGTRSModel(teacher_params, patch=PATCH,
                                       num_reg=NUM_REG, embed_dim=EMBED)
    student_model = SyntheticGTRSModel(student_params, patch=PATCH,
                                       num_reg=NUM_REG, embed_dim=EMBED)

    cfg = SimpleNamespace(
        training=True,
        inference=SimpleNamespace(model="teacher"),
        lab=SimpleNamespace(optimize_prev_frame_traj_for_ec=False,
                            update_buffer_in_ema=False),
        backbone_type="vit",
    )

    arch = AugMetaArch(cfg, teacher_model, student_model)

    teacher_ori_features = {
        "camera_feature": [img],
        "status_feature": [jnp.zeros((B, 8), jnp.float32)],
    }
    student_feat_dict_lst = [
        {"camera_feature": [img]},
        {"camera_feature": [img_aug]},
    ]
    collated_masks = jax.random.bernoulli(k_m, 0.3, (B, NUM_PATCHES))

    teacher_pred, student_preds, loss_dict = arch.forward(
        teacher_ori_features, student_feat_dict_lst, collated_masks=collated_masks)

    jax.block_until_ready(teacher_pred["x_norm_patchtokens"])
    for sp in student_preds:
        jax.block_until_ready(sp["x_norm_patchtokens"])

    # shape checks
    assert teacher_pred["x_norm_clstoken"].shape == (B, EMBED)
    assert teacher_pred["x_norm_regtokens"].shape == (B, NUM_REG, EMBED)
    assert teacher_pred["x_norm_patchtokens"].shape == (B, NUM_PATCHES, EMBED)
    assert len(student_preds) == 2 and loss_dict == {}
    assert student_preds[0]["masks"] is collated_masks
    assert student_preds[1]["masks"] is None

    # numerical check vs f32 reference (bf16 MXU operands -> small drift)
    # NOTE the name swap: AugMetaArch's "teacher" slot holds student_model.
    ref_t = reference_backbone(student_params, img, patch=PATCH, num_reg=NUM_REG)
    diff_t = jnp.max(jnp.abs(teacher_pred["x_norm_patchtokens"]
                             - ref_t[:, NUM_REG + 1:]))
    ref_s0 = reference_backbone(teacher_params, img, masks=collated_masks,
                                patch=PATCH, num_reg=NUM_REG)
    diff_s0 = jnp.max(jnp.abs(student_preds[0]["x_norm_patchtokens"]
                              - ref_s0[:, NUM_REG + 1:]))
    assert jnp.all(jnp.isfinite(teacher_pred["x_prenorm"]))
    assert float(diff_t) < 0.1 and float(diff_s0) < 0.1

    print("KERNEL_OK")
</pallas_src>

<mosaic_0001>
module attributes {stable_mosaic.version = 11 : i64} {
  func.func @_patch_embed_kernel(%arg0: i32, %arg1: memref<8x48xf32, #tpu.memory_space<vmem>>, %arg2: memref<48x128xbf16, #tpu.memory_space<vmem>>, %arg3: memref<1x128xf32, #tpu.memory_space<vmem>>, %arg4: memref<8x128xf32, #tpu.memory_space<vmem>>) attributes {dimension_semantics = [#tpu.dimension_semantics<parallel>], iteration_bounds = array<i64: 4>, scalar_prefetch = 0 : i64, scratch_operands = 0 : i64, tpu.core_type = #tpu.core_type<tc>, window_params = [{transform_indices = @transform_0, window_bounds = array<i64: 8, 48>}, {pipeline_mode = #tpu.pipeline_mode<synchronous>, transform_indices = @transform_1, window_bounds = array<i64: 48, 128>}, {pipeline_mode = #tpu.pipeline_mode<synchronous>, transform_indices = @transform_2, window_bounds = array<i64: 1, 128>}, {transform_indices = @transform_3, window_bounds = array<i64: 8, 128>}]} {
    %c0 = arith.constant 0 : index
    %c0_0 = arith.constant 0 : index
    %0 = vector.load %arg1[%c0, %c0_0] : memref<8x48xf32, #tpu.memory_space<vmem>>, vector<8x48xf32>
    %1 = arith.truncf %0 : vector<8x48xf32> to vector<8x48xbf16>
    %c0_1 = arith.constant 0 : index
    %c0_2 = arith.constant 0 : index
    %2 = vector.load %arg2[%c0_1, %c0_2] : memref<48x128xbf16, #tpu.memory_space<vmem>>, vector<48x128xbf16>
    %cst = arith.constant dense<0.000000e+00> : vector<8x128xf32>
    %3 = tpu.matmul %1, %2, %cst {dimension_numbers = #tpu.dot_dimension_numbers<[1], [0], [0], [1], [0, 0, 1, 1], [], []>} : vector<8x48xbf16>, vector<48x128xbf16>, vector<8x128xf32> -> vector<8x128xf32>
    %c0_3 = arith.constant 0 : index
    %c0_4 = arith.constant 0 : index
    %4 = vector.load %arg3[%c0_3, %c0_4] : memref<1x128xf32, #tpu.memory_space<vmem>>, vector<1x128xf32>
    %5 = vector.broadcast %4 : vector<1x128xf32> to vector<8x128xf32>
    %6 = arith.addf %3, %5 : vector<8x128xf32>
    %c0_5 = arith.constant 0 : index
    %c0_6 = arith.constant 0 : index
    %7 = vector.load %arg4[%c0_5, %c0_6] : memref<8x128xf32, #tpu.memory_space<vmem>>, vector<8x128xf32>
    tpu.vector_store %arg4[%c0_5, %c0_6], %6 {strides = array<i32>} : memref<8x128xf32, #tpu.memory_space<vmem>>, vector<8x128xf32>,
    return
  }
  func.func @transform_0(%arg0: i32) -> (i32, i32) {
    %c0_i32 = arith.constant 0 : i32
    %c0_i32_0 = arith.constant 0 : i32
    return %arg0, %c0_i32 : i32, i32
  }
  func.func @transform_1(%arg0: i32) -> (i32, i32) {
    %c0_i32 = arith.constant 0 : i32
    %c0_i32_0 = arith.constant 0 : i32
    %c0_i32_1 = arith.constant 0 : i32
    return %c0_i32, %c0_i32_0 : i32, i32
  }
  func.func @transform_2(%arg0: i32) -> (i32, i32) {
    %c0_i32 = arith.constant 0 : i32
    %c0_i32_0 = arith.constant 0 : i32
    %c0_i32_1 = arith.constant 0 : i32
    return %c0_i32, %c0_i32_0 : i32, i32
  }
  func.func @transform_3(%arg0: i32) -> (i32, i32) {
    %c0_i32 = arith.constant 0 : i32
    %c0_i32_0 = arith.constant 0 : i32
    return %arg0, %c0_i32 : i32, i32
  }
}

</mosaic_0001>

<llo_original>
// kernel: tpu_custom_call.1
$region0: #{tpu_custom_call.1}
  #allocation0 [shape = 'u32[]', space=smem, size = 0x4, offset = 0x4, fixed_abs, tag = 'smem constant byte address 0x4 - core index']
  #allocation1 [shape = 'u32[144,128]{1,0:T(1,128)}', space=vmem, size = 0x12000, scoped, tag = 'internal scratch']
  %s0 = inlined_call_operand.hbm [shape: f32[32,48], index: 0, kind: input, shape index: {}]
  %s1 = inlined_call_operand.hbm [shape: bf16[48,128], index: 1, kind: input, shape index: {}]
  %s2 = inlined_call_operand.vmem [shape: f32[1,128], index: 2, kind: input, shape index: {}]
  %s3 = inlined_call_operand.hbm [shape: f32[32,128], index: 3, kind: output, shape index: {}]
  %s4 = sld [smem:[#allocation0]]
  $region53: #{tpu_custom_call.1} parent=0
    _
  %s6 = ssub.s32 1, %s4
  %s7 = scalar_select 0, %s6, %s4
  $region1: #{tpu_custom_call.1} parent=0
    #allocation2 [shape = 'u8[8192]{0}', space=vmem, size = 0x2000, scoped, tag = 'input window, operand 0']
    #allocation3 [shape = 's32[2]{0}', space=sflag, size = 0x8, scoped, tag = 'scoped memory for tpu_custom_call.1']
    #allocation4 [shape = 's32[2]{0}', space=sflag, size = 0x8, scoped, tag = 'scoped memory for tpu_custom_call.1']
    #allocation5 [shape = 'u8[12288]{0}', space=vmem, size = 0x3000, scoped, tag = 'input window, operand 1, single buffered']
    #allocation6 [shape = 's32[1]{0}', space=sflag, size = 0x4, scoped, tag = 'scoped memory for tpu_custom_call.1']
    #allocation7 [shape = 'u8[8192]{0}', space=vmem, size = 0x2000, scoped, tag = 'output window, operand 0']
    %8 = vsyncpa [#allocation3], 0
    %s9 = scalar_lea.sflag [#allocation3], 1
    %10 = vsyncpa %s9, 0
    %11 = vsyncpa [#allocation6], 0
    %12 = vsyncpa [#allocation4], 0
    %s13 = scalar_lea.sflag [#allocation4], 1
    %14 = vsyncpa %s13, 0
    loop: start=0, step=1, limit=6
    $region2: #{tpu_custom_call.1} parent=1 // loop_pre_header
      _
    $region3: #{tpu_custom_call.1} parent=1 // loop_header
      %s16 = sphi 0, %s20
      %p17 = scmp.ge.s32.totalorder %s16, 6
      %s26 = sphi 0, %s28
      %s29 = sphi 0, %s26
      %s30 = sphi 0, %s29
      %s46 = sphi 0, %s30
      %s50 = sphi 0, %s50
      %s52 = sphi 0, %s50
      %s53 = sphi 0, %s52
      %s67 = sphi 0, %s53
      %s71 = sphi 0, %s71
      %s73 = sphi 0, %s71
      %s74 = sphi 0, %s73
      %s88 = sphi 0, %s74
      %s94 = sphi 0, %s96
      %s97 = sphi 0, %s94
      %s98 = sphi 0, %s97
      %s114 = sphi 0, %s98
    $region4: #{tpu_custom_call.1} parent=1 // loop_header_branch
      %19 = sbr.rel (%p17) target = $region8
    $region5: #{tpu_custom_call.1} parent=1 // loop_body
      %s21 = ssub.s32 %s16, 1
      %s22 = ssub.s32 %s16, 2
      %s23 = sadd.s32 %s16, 1
      %s24 = ssub.s32 %s16, %s23
      %p25 = scmp.eq.s32.totalorder %s24, 0
      %s27 = sadd.s32 %s26, 1
      %s28 = scalar_select %p25, %s26, %s27
      %p31 = pneg %p25
      %p32 = scmp.eq.s32.totalorder %s16, 3
      %p33 = por %p31, %p32
      %p34 = scmp.ne.s32.totalorder %s26, %s29
      %p35 = scmp.eq.s32.totalorder %s16, 0
      %p36 = por %p34, %p35
      %p37 = scmp.ne.s32.totalorder %s26, %s29
      %p38 = scmp.eq.s32.totalorder %s21, 3
      %p39 = por %p37, %p38
      %p40 = scmp.ne.s32.totalorder %s29, %s30
      %p41 = scmp.eq.s32.totalorder %s21, 0
      %p42 = por %p40, %p41
      %p43 = scmp.ne.s32.totalorder %s29, %s30
      %p44 = scmp.eq.s32.totalorder %s22, 3
      %p45 = por %p43, %p44
      %p47 = scmp.ne.s32.totalorder %s30, %s46
      %p48 = scmp.eq.s32.totalorder %s22, 0
      %p49 = por %p47, %p48
      %s51 = sadd.s32 %s50, 1
      %p54 = scmp.eq.s32.totalorder %s16, 3
      %p55 = scmp.ne.s32.totalorder %s50, %s52
      %p56 = scmp.eq.s32.totalorder %s16, 0
      %p57 = por %p55, %p56
      %p58 = scmp.ne.s32.totalorder %s50, %s52
      %p59 = scmp.eq.s32.totalorder %s21, 3
      %p60 = por %p58, %p59
      %p61 = scmp.ne.s32.totalorder %s52, %s53
      %p62 = scmp.eq.s32.totalorder %s21, 0
      %p63 = por %p61, %p62
      %p64 = scmp.ne.s32.totalorder %s52, %s53
      %p65 = scmp.eq.s32.totalorder %s22, 3
      %p66 = por %p64, %p65
      %p68 = scmp.ne.s32.totalorder %s53, %s67
      %p69 = scmp.eq.s32.totalorder %s22, 0
      %p70 = por %p68, %p69
      %s72 = sadd.s32 %s71, 1
      %p75 = scmp.eq.s32.totalorder %s16, 3
      %p76 = scmp.ne.s32.totalorder %s71, %s73
      %p77 = scmp.eq.s32.totalorder %s16, 0
      %p78 = por %p76, %p77
      %p79 = scmp.ne.s32.totalorder %s71, %s73
      %p80 = scmp.eq.s32.totalorder %s21, 3
      %p81 = por %p79, %p80
      %p82 = scmp.ne.s32.totalorder %s73, %s74
      %p83 = scmp.eq.s32.totalorder %s21, 0
      %p84 = por %p82, %p83
      %p85 = scmp.ne.s32.totalorder %s73, %s74
      %p86 = scmp.eq.s32.totalorder %s22, 3
      %p87 = por %p85, %p86
      %p89 = scmp.ne.s32.totalorder %s74, %s88
      %p90 = scmp.eq.s32.totalorder %s22, 0
      %p91 = por %p89, %p90
      %s92 = ssub.s32 %s16, %s23
      %p93 = scmp.eq.s32.totalorder %s92, 0
      %s95 = sadd.s32 %s94, 1
      %s96 = scalar_select %p93, %s94, %s95
      %p99 = pneg %p93
      %p100 = scmp.eq.s32.totalorder %s16, 3
      %p101 = por %p99, %p100
      %p102 = scmp.ne.s32.totalorder %s94, %s97
      %p103 = scmp.eq.s32.totalorder %s16, 0
      %p104 = por %p102, %p103
      %p105 = scmp.ne.s32.totalorder %s94, %s97
      %p106 = scmp.eq.s32.totalorder %s21, 3
      %p107 = por %p105, %p106
      %p108 = scmp.ne.s32.totalorder %s97, %s98
      %p109 = scmp.eq.s32.totalorder %s21, 0
      %p110 = por %p108, %p109
      %p111 = scmp.ne.s32.totalorder %s97, %s98
      %p112 = scmp.eq.s32.totalorder %s22, 3
      %p113 = por %p111, %p112
      %p115 = scmp.ne.s32.totalorder %s98, %s114
      %p116 = scmp.eq.s32.totalorder %s22, 0
      %p117 = por %p115, %p116
      %p118 = scmp.le.s32.totalorder 1, %s16
      %p119 = scmp.lt.s32.totalorder %s16, 5
      %p120 = pnand %p118, %p119
      %p121 = pneg %p120
      // Predicated region
      $region9: #{tpu_custom_call.1} parent=5 // pred_check
        _
      $region10: #{tpu_custom_call.1} parent=5 // pred_check_branch
        %123 = sbr.rel (%p120) target = $region12
      $region11: #{tpu_custom_call.1} parent=5 // pred_region
        %s124 = ssub.s32 %s16, 1
        // Predicated region
        $region13: #{tpu_custom_call.1} parent=11 // pred_check
          %p125 = pneg %p63
        $region14: #{tpu_custom_call.1} parent=11 // pred_check_branch
          %127 = sbr.rel (%p125) target = $region16
        $region15: #{tpu_custom_call.1} parent=11 // pred_region
          %s129 = ssub.s32 384, 384
          %130 = vsyncadd [#allocation6], %s129
          %s131 = sshll.u32 [#allocation5], 4
          %s132 = int_to_ptr.vmem [resolvable:$true] %s131
          %137 = dma.hbm_to_vmem [thread:$0]  %s1, 384, %s132, [#allocation6], 64, 64, 4
        $region16: #{tpu_custom_call.1} parent=11 // pred_fallthru
          _
        // Predicated region
        $region17: #{tpu_custom_call.1} parent=11 // pred_check
          %p138 = pneg %p84
        $region18: #{tpu_custom_call.1} parent=11 // pred_check_branch
          %140 = sbr.rel (%p138) target = $region20
        $region19: #{tpu_custom_call.1} parent=11 // pred_region
          _
        $region20: #{tpu_custom_call.1} parent=11 // pred_fallthru
          _
      $region12: #{tpu_custom_call.1} parent=5 // pred_fallthru
        _
      %p141 = scmp.lt.s32.totalorder %s16, 4
      // Predicated region
      $region21: #{tpu_custom_call.1} parent=5 // pred_check
        %p142 = pneg %p141
      $region22: #{tpu_custom_call.1} parent=5 // pred_check_branch
        %144 = sbr.rel (%p142) target = $region24
      $region23: #{tpu_custom_call.1} parent=5 // pred_region
        // Predicated region
        $region25: #{tpu_custom_call.1} parent=23 // pred_check
          %p145 = pneg %p36
        $region26: #{tpu_custom_call.1} parent=23 // pred_check_branch
          %147 = sbr.rel (%p145) target = $region28
        $region27: #{tpu_custom_call.1} parent=23 // pred_region
          %s148 = sand.u32 %s26, 1
          %s149 = scalar_lea.sflag [#allocation3], %s148
          %s150 = sand.u32 %s26, 1
          %s151 = smul.addr %s150, 8
          %s152 = scalar_lea.vmem [#allocation2], %s151
          %s154 = ssub.s32 128, 128
          %155 = vsyncadd %s149, %s154
          %s156 = smul.addr %s16, 128
          %s157 = scalar_lea.hbm %s0, %s156
          %s159 = sshll.u32 %s152, 4
          %s160 = int_to_ptr.vmem [resolvable:$true] %s159
          %162 = dma.hbm_to_vmem [thread:$0]  %s157, 128, %s160, %s149
        $region28: #{tpu_custom_call.1} parent=23 // pred_fallthru
          _
      $region24: #{tpu_custom_call.1} parent=5 // pred_fallthru
        _
      %p163 = scmp.le.s32.totalorder 1, %s16
      %p164 = scmp.lt.s32.totalorder %s16, 5
      %p165 = pnand %p163, %p164
      %p166 = pneg %p165
      // Predicated region
      $region29: #{tpu_custom_call.1} parent=5 // pred_check
        _
      $region30: #{tpu_custom_call.1} parent=5 // pred_check_branch
        %168 = sbr.rel (%p165) target = $region32
      $region31: #{tpu_custom_call.1} parent=5 // pred_region
        %s169 = ssub.s32 %s16, 1
        %s170 = sand.u32 %s29, 1
        %s171 = scalar_lea.sflag [#allocation3], %s170
        %s172 = sand.u32 %s29, 1
        %s173 = smul.addr %s172, 8
        %s174 = scalar_lea.vmem [#allocation2], %s173
        // Predicated region
        $region33: #{tpu_custom_call.1} parent=31 // pred_check
          %p175 = pneg %p42
        $region34: #{tpu_custom_call.1} parent=31 // pred_check_branch
          %177 = sbr.rel (%p175) target = $region36
        $region35: #{tpu_custom_call.1} parent=31 // pred_region
          %178 = dma.done %s171, 128
        $region36: #{tpu_custom_call.1} parent=31 // pred_fallthru
          _
        // Predicated region
        $region37: #{tpu_custom_call.1} parent=31 // pred_check
          %p179 = pneg %p63
        $region38: #{tpu_custom_call.1} parent=31 // pred_check_branch
          %181 = sbr.rel (%p179) target = $region40
        $region39: #{tpu_custom_call.1} parent=31 // pred_region
          %182 = dma.done [#allocation6], 384
        $region40: #{tpu_custom_call.1} parent=31 // pred_fallthru
          _
        %s183 = sand.u32 %s29, 1
        %s184 = scalar_lea.sflag [#allocation3], %s183
        %s185 = sand.u32 %s29, 1
        %s186 = smul.addr %s185, 8
        %s187 = scalar_lea.vmem [#allocation2], %s186
        %p188 = pneg %p42
        %p189 = pneg %p39
        %p190 = pneg %p63
        %p191 = pneg %p60
        %p192 = pneg %p84
        %p193 = pneg %p81
        %p194 = pneg %p110
        %p195 = pneg %p107
        %s196 = sand.u32 %s97, 1
        %s197 = scalar_lea.sflag [#allocation4], %s196
        %s198 = sand.u32 %s97, 1
        %s199 = smul.addr %s198, 8
        %s200 = scalar_lea.vmem [#allocation7], %s199
        %v202 = vld [vmem:[%s174] sm:$0xff]
        %v203 = vpack.c.bf16 %v202, %v202
        %v204 = vld [vmem:[#allocation5] sm:$0xf]
        %v205 = vld [vmem:[#allocation5 + $0x4] sm:$0xf]
        %v206 = vld [vmem:[#allocation5 + $0x8] sm:$0xf]
        %v207 = vld [vmem:[#allocation5 + $0xc] sm:$0xf]
        %v208 = vld [vmem:[#allocation5 + $0x10] sm:$0xf]
        %v209 = vld [vmem:[#allocation5 + $0x14] sm:$0xf]
        %v210 = vld [vmem:[%s2] sm:$0x1]
        %v212 = vlaneseq
        %v213 = vshrl.u32 %v212, 7
        %v214 = vsub.s32 0, %v213
        %v215 = vrot.slane %v210, %v214
        %v223 = vunpack.c.l.b16 %v204
        %v224 = vunpack.c.l.b16 %v205
        %v225 = vunpack.c.l.b16 %v206
        %v226 = vunpack.c.l.b16 %v207
        %v227 = vunpack.c.l.b16 %v208
        %v228 = vunpack.c.l.b16 %v209
        %v229 = vpack.c.b16 %v224, %v223
        %v230 = vpack.c.b16 %v226, %v225
        %v231 = vpack.c.b16 %v228, %v227
        %vm235 = vcmask 392192
        %v237 = vsel %vm235, %v203, 0
        %239 = vmatprep.subr.bf16.mxu0 0
        %240 = vmatpush1.bf16.msra.mxu0 %v229
        %241 = vmatprep.subr.bf16.mxu0 0
        %242 = vmatpush1.bf16.msra.mxu0 %v230
        %243 = vmatprep.subr.bf16.mxu0 0
        %244 = vmatpush1.bf16.msra.mxu0 %v231
        %245 = vmatprep.subr.bf16.mxu0 0
        %246 = vmatpush1.bf16.msra.mxu0 0
        %247 = vmatprep.subr.bf16.mxu0 0
        %248 = vmatpush1.bf16.msra.mxu0 0
        %249 = vmatprep.subr.bf16.mxu0 0
        %250 = vmatpush1.bf16.msra.mxu0 0
        %251 = vmatprep.subr.bf16.mxu0 0
        %252 = vmatpush1.bf16.msra.mxu0 0
        %253 = vmatprep.subr.bf16.mxu0 0
        %254 = vmatpush1.bf16.msra.mxu0 0
        %255 = vmatprep.subr.bf16.mxu0 0
        %256 = vmatpush1.bf16.msra.mxu0 0
        %257 = vmatprep.subr.bf16.mxu0 0
        %258 = vmatpush1.bf16.msra.mxu0 0
        %259 = vmatprep.subr.bf16.mxu0 0
        %260 = vmatpush1.bf16.msra.mxu0 0
        %261 = vmatprep.subr.bf16.mxu0 0
        %262 = vmatpush1.bf16.msra.mxu0 0
        %263 = vmatprep.subr.bf16.mxu0 0
        %264 = vmatpush1.bf16.msra.mxu0 0
        %265 = vmatprep.subr.bf16.mxu0 0
        %266 = vmatpush1.bf16.msra.mxu0 0
        %267 = vmatprep.subr.bf16.mxu0 0
        %268 = vmatpush1.bf16.msra.mxu0 0
        %269 = vmatprep.subr.bf16.mxu0 0
        %270 = vmatpush1.bf16.msra.mxu0 0
        %271 = vmatprep.mubr.bf16.mxu0 0
        %272 = vmatmul.mubr.bf16.gmra.mrb[0].mxu0 %v237
        %v273 = vpop.f32.mrb[0].mxu0
        %v274 = vadd.f32 %v215, %v273
        %v275 = vpop.f32.mrb[0].mxu0
        %v276 = vpop.f32.mrb[0].mxu0
        %v277 = vpop.f32.mrb[0].mxu0
        %278 = vdwg.mxu0
        %279 = vst [vmem:[%s200] sm:$0xff] %v274
        %s280 = sand.u32 %s97, 1
        %s281 = scalar_lea.sflag [#allocation4], %s280
        %s282 = sand.u32 %s97, 1
        %s283 = smul.addr %s282, 8
        %s284 = scalar_lea.vmem [#allocation7], %s283
        // Predicated region
        $region41: #{tpu_custom_call.1} parent=31 // pred_check
          %p285 = pneg %p107
        $region42: #{tpu_custom_call.1} parent=31 // pred_check_branch
          %287 = sbr.rel (%p285) target = $region44
        $region43: #{tpu_custom_call.1} parent=31 // pred_region
          %s289 = ssub.s32 128, 128
          %290 = vsyncadd %s281, %s289
          %s291 = smul.addr %s21, 128
          %s292 = scalar_lea.hbm %s3, %s291
          %s294 = sshll.u32 %s284, 4
          %s295 = int_to_ptr.vmem [resolvable:$true] %s294
          %297 = dma.vmem_to_hbm [thread:$0]  %s295, 128, %s292, %s281
        $region44: #{tpu_custom_call.1} parent=31 // pred_fallthru
          _
      $region32: #{tpu_custom_call.1} parent=5 // pred_fallthru
        _
      %p298 = scmp.le.s32.totalorder 2, %s16
      // Predicated region
      $region45: #{tpu_custom_call.1} parent=5 // pred_check
        %p299 = pneg %p298
      $region46: #{tpu_custom_call.1} parent=5 // pred_check_branch
        %301 = sbr.rel (%p299) target = $region48
      $region47: #{tpu_custom_call.1} parent=5 // pred_region
        %s302 = ssub.s32 %s16, 2
        // Predicated region
        $region49: #{tpu_custom_call.1} parent=47 // pred_check
          %p303 = pneg %p113
        $region50: #{tpu_custom_call.1} parent=47 // pred_check_branch
          %305 = sbr.rel (%p303) target = $region52
        $region51: #{tpu_custom_call.1} parent=47 // pred_region
          %s306 = sand.u32 %s98, 1
          %s307 = scalar_lea.sflag [#allocation4], %s306
          %s308 = sand.u32 %s98, 1
          %s309 = smul.addr %s308, 8
          %s310 = scalar_lea.vmem [#allocation7], %s309
          %311 = dma.done %s307, 128
        $region52: #{tpu_custom_call.1} parent=47 // pred_fallthru
          _
      $region48: #{tpu_custom_call.1} parent=5 // pred_fallthru
        _
    $region6: #{tpu_custom_call.1} parent=1 // loop_footer
      %s20 = sadd.s32 1, %s16
    $region7: #{tpu_custom_call.1} parent=1 // loop_footer_branch
      %15 = sbr.rel target = $region3
    $region8: #{tpu_custom_call.1} parent=1 // loop_exit
      _
    %312 = vsyncpa [#allocation3], 1
    %s313 = scalar_lea.sflag [#allocation3], 1
    %314 = vsyncpa %s313, 1
    %315 = vsyncpa [#allocation6], 1
    %316 = vsyncpa [#allocation4], 1
    %s317 = scalar_lea.sflag [#allocation4], 1
    %318 = vsyncpa %s317, 1

</llo_original>
